<compile_context>
chip_gen: v7x
topology: tpu7x:2x2x1
jax: 0.10.0
libtpu: 0.0.40
codegen_flags: <defaults>
</compile_context>

<pallas_src>
import jax
import jax.numpy as jnp
from jax import lax
from jax.experimental import pallas as pl
from jax.experimental.pallas import tpu as pltpu


def _round_up(x, m):
    return ((x + m - 1) // m) * m


def _vmem_estimate(T, Sp, Dp, itemsize, resident):
    """Rough per-core VMEM footprint (bytes): pipeline buffers + scratch."""
    tile = T * Dp * itemsize
    k_buf = (Sp if resident else T) * Dp * itemsize
    return (
        2 * tile            # xq double buffer
        + 2 * k_buf         # xk buffer(s) (resident: full k side)
        + 2 * tile          # out double buffer
        + T * Dp * 4        # f32 accumulator scratch
        + T * 128 * 4       # inv_q scratch (lane-padded)
        + 2 * T * T * 4     # sim tile + f32 temporaries
        + 3 * T * Dp * 4    # f32 casts / normalized k tile temporaries
    )


def _make_age_kernel(s_actual, t_seq, pad_s, resident, mm_dtype):
    """Kernel over one (q-tile, k-tile) pair of a single batch element.

    Refs (batch dim squeezed away by the BlockSpec):
      xq_ref : (T, Dp)            query-side rows of tgt
      xk_ref : (T, Dp) or (Sp,Dp) key-side rows (streamed tile or resident)
      o_ref  : (T, Dp)            output rows
      acc_ref: (T, Dp) f32        accumulator, resident across the k axis
      invq_ref: (T, 1) f32        cached inverse norms of the q tile
    """

    def kernel(xq_ref, xk_ref, o_ref, acc_ref, invq_ref):
        q_idx = pl.program_id(1)
        k_idx = pl.program_id(2)

        # ---- once per (b, q) tile: zero accumulator, cache inv_q ----------
        # (k is the "arbitrary" reduction axis, so k == 0 always runs first.)
        @pl.when(k_idx == 0)
        def _init():
            acc_ref[...] = jnp.zeros_like(acc_ref)
            xq32 = xq_ref[...].astype(jnp.float32)
            inv_q = lax.rsqrt(jnp.sum(xq32 * xq32, axis=-1, keepdims=True))
            if pad_s:
                # Zero padded rows: avoids 0 * inf = NaN and zeroes their
                # output rows (sliced off by the wrapper anyway).
                row = lax.broadcasted_iota(jnp.int32, inv_q.shape, 0)
                inv_q = jnp.where(row + q_idx * t_seq < s_actual, inv_q, 0.0)
            invq_ref[...] = inv_q

        # ---- current k tile (slice of resident buffer or streamed tile) ---
        if resident:
            k_off = pl.multiple_of(k_idx * t_seq, t_seq)
            xk = xk_ref[pl.ds(k_off, t_seq), :]
        else:
            xk = xk_ref[...]
        xk32 = xk.astype(jnp.float32)

        # k-side inverse norms (rsqrt -> EUP slot, overlaps MXU work).
        inv_k = lax.rsqrt(jnp.sum(xk32 * xk32, axis=-1, keepdims=True))
        if pad_s:
            # O(T) mask (was an O(T^2) mask on the sim tile): zeroing inv_k on
            # padded rows makes their columns of `sim` exactly tanh(0) = 0.
            row = lax.broadcasted_iota(jnp.int32, inv_k.shape, 0)
            inv_k = jnp.where(row + k_idx * t_seq < s_actual, inv_k, 0.0)

        # Normalize only the k-side rows (cheap (T,1) broadcast; keeps raw xk
        # for the second matmul).  MXU operands in mm_dtype, accumulate f32.
        xk_n = (xk32 * inv_k).astype(mm_dtype)
        xq = xq_ref[...].astype(mm_dtype)

        # xq @ xk_n^T without an explicit transpose (contract last dims).
        raw = lax.dot_general(
            xq,
            xk_n,
            dimension_numbers=(((1,), (1,)), ((), ())),
            preferred_element_type=jnp.float32,
        )  # (T, T)

        # Fold the cached q-side normalization as a rank-1 row scale, tanh.
        sim = jnp.tanh(raw * invq_ref[...])

        # weighted_tgt tile: sim @ tgt_k (MXU, f32 accumulation).
        acc_ref[...] += jnp.dot(
            sim.astype(mm_dtype), xk.astype(mm_dtype),
            preferred_element_type=jnp.float32,
        )

        @pl.when(k_idx == pl.num_programs(2) - 1)
        def _finalize():
            o_ref[...] = acc_ref[...].astype(o_ref.dtype)

    return kernel


def age_forward(tgt, *, tile_cap=512, vmem_budget_bytes=24 << 20,
                bf16_matmul=False):
    """Pallas TPU implementation of AGE.forward (module has no parameters)."""
    B, S, D = tgt.shape
    itemsize = jnp.dtype(tgt.dtype).itemsize
    Dp = _round_up(D, 128)

    # ---- sequence tile: VMEM-budgeted, multiple of 8, prefer an S-divisor --
    T = max(8, (min(tile_cap, _round_up(S, 8)) // 8) * 8)
    while T > 8 and _vmem_estimate(T, _round_up(S, T), Dp, itemsize, False) > vmem_budget_bytes:
        T = max(8, (T // 2 // 8) * 8)
    if B == 1:
        # Keep >= 2 parallel work units so both v7x TensorCores get work.
        while T > 8 and pl.cdiv(_round_up(S, 8), T) < 2:
            T = max(8, (T // 2 // 8) * 8)
    for cand in range(T, max(8, T // 2) - 1, -8):
        if S % cand == 0:   # no sequence padding -> wrapper pad/slice no-ops
            T = cand
            break

    Sp = _round_up(S, T)
    pad_s, pad_d = Sp - S, Dp - D
    n_t = Sp // T

    # Keep the whole k side resident in VMEM when it fits: one HBM fetch per
    # batch (per core) instead of n_q re-streams of the key rows.
    resident = n_t > 1 and _vmem_estimate(T, Sp, Dp, itemsize, True) <= vmem_budget_bytes

    x = tgt
    if pad_s or pad_d:
        x = jnp.pad(tgt, ((0, 0), (0, pad_s), (0, pad_d)))

    mm_dtype = jnp.bfloat16 if (bf16_matmul and tgt.dtype == jnp.float32) else tgt.dtype
    kernel = _make_age_kernel(S, T, pad_s, resident, mm_dtype)

    if resident:
        xk_spec = pl.BlockSpec((pl.Squeezed(), Sp, Dp), lambda b, q, k: (b, 0, 0))
    else:
        xk_spec = pl.BlockSpec((pl.Squeezed(), T, Dp), lambda b, q, k: (b, k, 0))

    out = pl.pallas_call(
        kernel,
        out_shape=jax.ShapeDtypeStruct((B, Sp, Dp), tgt.dtype),
        grid_spec=pltpu.PrefetchScalarGridSpec(
            num_scalar_prefetch=0,
            grid=(B, n_t, n_t),  # (batch, q tiles, k tiles) — reduction last
            in_specs=[
                pl.BlockSpec((pl.Squeezed(), T, Dp), lambda b, q, k: (b, q, 0)),
                xk_spec,
            ],
            out_specs=pl.BlockSpec(
                (pl.Squeezed(), T, Dp), lambda b, q, k: (b, q, 0)
            ),
            scratch_shapes=[
                pltpu.VMEM((T, Dp), jnp.float32),   # f32 accumulator
                pltpu.VMEM((T, 1), jnp.float32),    # inv_q cache (per q tile)
            ],
        ),
        compiler_params=pltpu.CompilerParams(
            dimension_semantics=("parallel", "parallel", "arbitrary"),
            vmem_limit_bytes=48 << 20,
        ),
    )(x, x)

    if pad_s or pad_d:
        out = out[:, :S, :D]
    return out


def age_ref(tgt):
    # Pure-JAX reference of the PyTorch forward pass.
    norm = jnp.linalg.norm(tgt, axis=-1, keepdims=True)
    tn = tgt / norm
    sim = jnp.tanh(jnp.einsum("bsd,btd->bst", tn, tn))
    return jnp.einsum("bst,btd->bsd", sim, tgt)


if __name__ == "__main__":
    key = jax.random.PRNGKey(0)

    # Small shapes consistent with the module's (batch, seq, d_model) input.
    B, S, D = 2, 8, 32
    tgt = jax.random.normal(key, (B, S, D), dtype=jnp.float32)
    out = age_forward(tgt)
    jax.block_until_ready(out)
    ref = age_ref(tgt)
    assert out.shape == (B, S, D)
    assert jnp.allclose(out, ref, atol=1e-4, rtol=1e-4)

    # Sequence padding / masking path (S not a tile multiple).
    tgt2 = jax.random.normal(jax.random.PRNGKey(1), (2, 10, 32), dtype=jnp.float32)
    out2 = age_forward(tgt2)
    jax.block_until_ready(out2)
    ref2 = age_ref(tgt2)
    assert out2.shape == tgt2.shape
    assert jnp.allclose(out2, ref2, atol=1e-4, rtol=1e-4)

    # Resident k-side + multi-k-tile accumulation path (tiny tile to force it).
    tgt3 = jax.random.normal(jax.random.PRNGKey(2), (2, 24, 32), dtype=jnp.float32)
    out3 = age_forward(tgt3, tile_cap=8)
    jax.block_until_ready(out3)
    ref3 = age_ref(tgt3)
    assert out3.shape == tgt3.shape
    assert jnp.allclose(out3, ref3, atol=1e-4, rtol=1e-4)

    # Streamed (non-resident) multi-k-tile path with padding (tiny VMEM budget).
    tgt4 = jax.random.normal(jax.random.PRNGKey(3), (2, 26, 32), dtype=jnp.float32)
    out4 = age_forward(tgt4, tile_cap=8, vmem_budget_bytes=40 * 1024)
    jax.block_until_ready(out4)
    ref4 = age_ref(tgt4)
    assert out4.shape == tgt4.shape
    assert jnp.allclose(out4, ref4, atol=1e-4, rtol=1e-4)

    print("KERNEL_OK")
</pallas_src>

<mosaic_0001>
module attributes {stable_mosaic.version = 11 : i64} {
  func.func @kernel(%arg0: i32, %arg1: i32, %arg2: i32, %arg3: memref<1x8x128xf32, #tpu.memory_space<vmem>>, %arg4: memref<1x8x128xf32, #tpu.memory_space<vmem>>, %arg5: memref<1x8x128xf32, #tpu.memory_space<vmem>>, %arg6: memref<8x128xf32, #tpu.memory_space<vmem>>, %arg7: memref<8x1xf32, #tpu.memory_space<vmem>>) attributes {dimension_semantics = [#tpu.dimension_semantics<parallel>, #tpu.dimension_semantics<parallel>, #tpu.dimension_semantics<arbitrary>], iteration_bounds = array<i64: 2, 1, 1>, scalar_prefetch = 0 : i64, scratch_operands = 2 : i64, tpu.core_type = #tpu.core_type<tc>, window_params = [{transform_indices = @transform_0, window_bounds = array<i64: 1, 8, 128>}, {transform_indices = @transform_1, window_bounds = array<i64: 1, 8, 128>}, {transform_indices = @transform_2, window_bounds = array<i64: 1, 8, 128>}]} {
    %c0_i32 = arith.constant 0 : i32
    %0 = arith.cmpi eq, %arg2, %c0_i32 : i32
    %1 = arith.extui %0 : i1 to i32
    %c0_i32_0 = arith.constant 0 : i32
    %2 = arith.cmpi ne, %1, %c0_i32_0 : i32
    scf.if %2 {
      %cst_16 = arith.constant 0.000000e+00 : f32
      %25 = vector.broadcast %cst_16 : f32 to vector<8x128xf32>
      %c0_17 = arith.constant 0 : index
      %c0_18 = arith.constant 0 : index
      %26 = vector.load %arg6[%c0_17, %c0_18] : memref<8x128xf32, #tpu.memory_space<vmem>>, vector<8x128xf32>
      tpu.vector_store %arg6[%c0_17, %c0_18], %25 {strides = array<i32>} : memref<8x128xf32, #tpu.memory_space<vmem>>, vector<8x128xf32>,
      %c0_19 = arith.constant 0 : index
      %c0_20 = arith.constant 0 : index
      %c0_21 = arith.constant 0 : index
      %27 = vector.load %arg3[%c0_19, %c0_20, %c0_21] : memref<1x8x128xf32, #tpu.memory_space<vmem>>, vector<1x8x128xf32>
      %28 = vector.shape_cast %27 : vector<1x8x128xf32> to vector<8x128xf32>
      %29 = arith.mulf %28, %28 : vector<8x128xf32>
      %cst_22 = arith.constant dense<0.000000e+00> : vector<8xf32>
      %30 = vector.multi_reduction <add>, %29, %cst_22 [1] : vector<8x128xf32> to vector<8xf32>
      %31 = vector.shape_cast %30 : vector<8xf32> to vector<8x1xf32>
      %32 = math.rsqrt %31 : vector<8x1xf32>
      %c0_23 = arith.constant 0 : index
      %c0_24 = arith.constant 0 : index
      %33 = vector.load %arg7[%c0_23, %c0_24] : memref<8x1xf32, #tpu.memory_space<vmem>>, vector<8x1xf32>
      tpu.vector_store %arg7[%c0_23, %c0_24], %32 {strides = array<i32>} : memref<8x1xf32, #tpu.memory_space<vmem>>, vector<8x1xf32>,
    } else {
    }
    %c0 = arith.constant 0 : index
    %c0_1 = arith.constant 0 : index
    %c0_2 = arith.constant 0 : index
    %3 = vector.load %arg4[%c0, %c0_1, %c0_2] : memref<1x8x128xf32, #tpu.memory_space<vmem>>, vector<1x8x128xf32>
    %4 = vector.shape_cast %3 : vector<1x8x128xf32> to vector<8x128xf32>
    %5 = arith.mulf %4, %4 : vector<8x128xf32>
    %cst = arith.constant dense<0.000000e+00> : vector<8xf32>
    %6 = vector.multi_reduction <add>, %5, %cst [1] : vector<8x128xf32> to vector<8xf32>
    %7 = vector.shape_cast %6 : vector<8xf32> to vector<8x1xf32>
    %8 = math.rsqrt %7 : vector<8x1xf32>
    %9 = vector.broadcast %8 : vector<8x1xf32> to vector<8x128xf32>
    %10 = arith.mulf %4, %9 : vector<8x128xf32>
    %c0_3 = arith.constant 0 : index
    %c0_4 = arith.constant 0 : index
    %c0_5 = arith.constant 0 : index
    %11 = vector.load %arg3[%c0_3, %c0_4, %c0_5] : memref<1x8x128xf32, #tpu.memory_space<vmem>>, vector<1x8x128xf32>
    %12 = vector.shape_cast %11 : vector<1x8x128xf32> to vector<8x128xf32>
    %cst_6 = arith.constant dense<0.000000e+00> : vector<8x8xf32>
    %13 = tpu.matmul %12, %10, %cst_6 {dimension_numbers = #tpu.dot_dimension_numbers<[1], [1], [0], [0], [0, 0, 1, 0], [], []>} : vector<8x128xf32>, vector<8x128xf32>, vector<8x8xf32> -> vector<8x8xf32>
    %c0_7 = arith.constant 0 : index
    %c0_8 = arith.constant 0 : index
    %14 = vector.load %arg7[%c0_7, %c0_8] : memref<8x1xf32, #tpu.memory_space<vmem>>, vector<8x1xf32>
    %15 = vector.broadcast %14 : vector<8x1xf32> to vector<8x8xf32>
    %16 = arith.mulf %13, %15 : vector<8x8xf32>
    %17 = math.tanh %16 : vector<8x8xf32>
    %c0_9 = arith.constant 0 : index
    %c0_10 = arith.constant 0 : index
    %18 = vector.load %arg6[%c0_9, %c0_10] : memref<8x128xf32, #tpu.memory_space<vmem>>, vector<8x128xf32>
    %cst_11 = arith.constant dense<0.000000e+00> : vector<8x128xf32>
    %19 = tpu.matmul %17, %4, %cst_11 {dimension_numbers = #tpu.dot_dimension_numbers<[1], [0], [0], [1], [0, 0, 1, 1], [], []>} : vector<8x8xf32>, vector<8x128xf32>, vector<8x128xf32> -> vector<8x128xf32>
    %20 = arith.addf %18, %19 : vector<8x128xf32>
    %c0_12 = arith.constant 0 : index
    %c0_13 = arith.constant 0 : index
    %21 = vector.load %arg6[%c0_12, %c0_13] : memref<8x128xf32, #tpu.memory_space<vmem>>, vector<8x128xf32>
    tpu.vector_store %arg6[%c0_12, %c0_13], %20 {strides = array<i32>} : memref<8x128xf32, #tpu.memory_space<vmem>>, vector<8x128xf32>,
    %c0_i32_14 = arith.constant 0 : i32
    %22 = arith.cmpi eq, %arg2, %c0_i32_14 : i32
    %23 = arith.extui %22 : i1 to i32
    %c0_i32_15 = arith.constant 0 : i32
    %24 = arith.cmpi ne, %23, %c0_i32_15 : i32
    scf.if %24 {
      %c0_16 = arith.constant 0 : index
      %c0_17 = arith.constant 0 : index
      %25 = vector.load %arg6[%c0_16, %c0_17] : memref<8x128xf32, #tpu.memory_space<vmem>>, vector<8x128xf32>
      %c0_18 = arith.constant 0 : index
      %c0_19 = arith.constant 0 : index
      %c0_20 = arith.constant 0 : index
      %26 = vector.load %arg5[%c0_18, %c0_19, %c0_20] : memref<1x8x128xf32, #tpu.memory_space<vmem>>, vector<1x8x128xf32>
      %27 = vector.shape_cast %26 : vector<1x8x128xf32> to vector<8x128xf32>
      %28 = vector.shape_cast %25 : vector<8x128xf32> to vector<1x8x128xf32>
      tpu.vector_store %arg5[%c0_18, %c0_19, %c0_20], %28 {strides = array<i32>} : memref<1x8x128xf32, #tpu.memory_space<vmem>>, vector<1x8x128xf32>,
    } else {
    }
    return
  }
  func.func @transform_0(%arg0: i32, %arg1: i32, %arg2: i32) -> (i32, i32, i32) {
    %c0_i32 = arith.constant 0 : i32
    %c0_i32_0 = arith.constant 0 : i32
    return %arg0, %arg1, %c0_i32 : i32, i32, i32
  }
  func.func @transform_1(%arg0: i32, %arg1: i32, %arg2: i32) -> (i32, i32, i32) {
    %c0_i32 = arith.constant 0 : i32
    %c0_i32_0 = arith.constant 0 : i32
    return %arg0, %arg2, %c0_i32 : i32, i32, i32
  }
  func.func @transform_2(%arg0: i32, %arg1: i32, %arg2: i32) -> (i32, i32, i32) {
    %c0_i32 = arith.constant 0 : i32
    %c0_i32_0 = arith.constant 0 : i32
    return %arg0, %arg1, %c0_i32 : i32, i32, i32
  }
}

</mosaic_0001>

<llo_original>
// kernel: tpu_custom_call.1
$region0: #{tpu_custom_call.1}
  #allocation0 [shape = 'u32[]', space=smem, size = 0x4, offset = 0x4, fixed_abs, tag = 'smem constant byte address 0x4 - core index']
  #allocation1 [shape = 'u32[144,128]{1,0:T(1,128)}', space=vmem, size = 0x12000, scoped, tag = 'internal scratch']
  #allocation2 [shape = 'f32[8,128]{1,0:T(8,128)}', space=vmem, size = 0x1000, scoped, tag = 'scratch operand']
  #allocation3 [shape = 'f32[8,1]{1,0:T(8,128)}', space=vmem, size = 0x1000, scoped, tag = 'scratch operand']
  %s0 = inlined_call_operand.hbm [shape: f32[2,8,128], index: 0, kind: input, shape index: {}]
  %s1 = inlined_call_operand.hbm [shape: f32[2,8,128], index: 1, kind: input, shape index: {}]
  %s2 = inlined_call_operand.hbm [shape: f32[2,8,128], index: 2, kind: output, shape index: {}]
  %s3 = sld [smem:[#allocation0]]
  $region57: #{tpu_custom_call.1} parent=0
    _
  %s5 = ssub.s32 1, %s3
  %s6 = scalar_select 0, %s5, %s3
  $region1: #{tpu_custom_call.1} parent=0
    #allocation4 [shape = 'u8[8192]{0}', space=vmem, size = 0x2000, scoped, tag = 'input window, operand 0']
    #allocation5 [shape = 's32[2]{0}', space=sflag, size = 0x8, scoped, tag = 'scoped memory for tpu_custom_call.1']
    #allocation6 [shape = 's32[2]{0}', space=sflag, size = 0x8, scoped, tag = 'scoped memory for tpu_custom_call.1']
    #allocation7 [shape = 'u8[8192]{0}', space=vmem, size = 0x2000, scoped, tag = 'input window, operand 1']
    #allocation8 [shape = 's32[2]{0}', space=sflag, size = 0x8, scoped, tag = 'scoped memory for tpu_custom_call.1']
    #allocation9 [shape = 'u8[8192]{0}', space=vmem, size = 0x2000, scoped, tag = 'output window, operand 0']
    %7 = vsyncpa [#allocation5], 0
    %s8 = scalar_lea.sflag [#allocation5], 1
    %9 = vsyncpa %s8, 0
    %10 = vsyncpa [#allocation8], 0
    %s11 = scalar_lea.sflag [#allocation8], 1
    %12 = vsyncpa %s11, 0
    %13 = vsyncpa [#allocation6], 0
    %s14 = scalar_lea.sflag [#allocation6], 1
    %15 = vsyncpa %s14, 0
    loop: start=0, step=1, limit=4
    $region2: #{tpu_custom_call.1} parent=1 // loop_pre_header
      _
    $region3: #{tpu_custom_call.1} parent=1 // loop_header
      %s17 = sphi 0, %s21
      %p18 = scmp.ge.s32.totalorder %s17, 4
      %s24 = sphi 0, %s43
      %s25 = sphi 0, %s39
      %s26 = sphi 0, %s35
      %s27 = sphi 0, %s24
      %s28 = sphi 0, %s25
      %s29 = sphi 0, %s26
      %s30 = sphi 0, %s27
      %s31 = sphi 0, %s28
      %s32 = sphi 0, %s29
      %s48 = sphi 0, %s50
      %s51 = sphi 0, %s48
      %s52 = sphi 0, %s51
      %s68 = sphi 0, %s52
      %s76 = sphi 0, %s78
      %s79 = sphi 0, %s76
      %s80 = sphi 0, %s79
      %s96 = sphi 0, %s80
      %s104 = sphi 0, %s106
      %s107 = sphi 0, %s104
      %s108 = sphi 0, %s107
      %s124 = sphi 0, %s108
    $region4: #{tpu_custom_call.1} parent=1 // loop_header_branch
      %20 = sbr.rel (%p18) target = $region8
    $region5: #{tpu_custom_call.1} parent=1 // loop_body
      %s22 = ssub.s32 %s17, 1
      %s23 = ssub.s32 %s17, 2
      %s33 = sadd.s32 1, %s26
      %p34 = scmp.ge.s32.totalorder %s33, 1
      %s35 = scalar_select %p34, 0, %s33
      %s36 = sadd.s32 1, %s25
      %s37 = scalar_select %p34, %s36, %s25
      %p38 = scmp.ge.s32.totalorder %s37, 1
      %s39 = scalar_select %p38, 0, %s37
      %s40 = sadd.s32 1, %s24
      %s41 = scalar_select %p38, %s40, %s24
      %p42 = scmp.ge.s32.totalorder %s41, 2
      %s43 = scalar_select %p42, 0, %s41
      %s44 = ssub.s32 %s24, %s43
      %s45 = ssub.s32 %s25, %s39
      %s46 = sor.u32 %s44, %s45
      %p47 = scmp.eq.s32.totalorder %s46, 0
      %s49 = sadd.s32 %s48, 1
      %s50 = scalar_select %p47, %s48, %s49
      %p53 = pneg %p47
      %p54 = scmp.eq.s32.totalorder %s17, 1
      %p55 = por %p53, %p54
      %p56 = scmp.ne.s32.totalorder %s48, %s51
      %p57 = scmp.eq.s32.totalorder %s17, 0
      %p58 = por %p56, %p57
      %p59 = scmp.ne.s32.totalorder %s48, %s51
      %p60 = scmp.eq.s32.totalorder %s22, 1
      %p61 = por %p59, %p60
      %p62 = scmp.ne.s32.totalorder %s51, %s52
      %p63 = scmp.eq.s32.totalorder %s22, 0
      %p64 = por %p62, %p63
      %p65 = scmp.ne.s32.totalorder %s51, %s52
      %p66 = scmp.eq.s32.totalorder %s23, 1
      %p67 = por %p65, %p66
      %p69 = scmp.ne.s32.totalorder %s52, %s68
      %p70 = scmp.eq.s32.totalorder %s23, 0
      %p71 = por %p69, %p70
      %s72 = ssub.s32 %s24, %s43
      %s73 = ssub.s32 %s26, %s35
      %s74 = sor.u32 %s72, %s73
      %p75 = scmp.eq.s32.totalorder %s74, 0
      %s77 = sadd.s32 %s76, 1
      %s78 = scalar_select %p75, %s76, %s77
      %p81 = pneg %p75
      %p82 = scmp.eq.s32.totalorder %s17, 1
      %p83 = por %p81, %p82
      %p84 = scmp.ne.s32.totalorder %s76, %s79
      %p85 = scmp.eq.s32.totalorder %s17, 0
      %p86 = por %p84, %p85
      %p87 = scmp.ne.s32.totalorder %s76, %s79
      %p88 = scmp.eq.s32.totalorder %s22, 1
      %p89 = por %p87, %p88
      %p90 = scmp.ne.s32.totalorder %s79, %s80
      %p91 = scmp.eq.s32.totalorder %s22, 0
      %p92 = por %p90, %p91
      %p93 = scmp.ne.s32.totalorder %s79, %s80
      %p94 = scmp.eq.s32.totalorder %s23, 1
      %p95 = por %p93, %p94
      %p97 = scmp.ne.s32.totalorder %s80, %s96
      %p98 = scmp.eq.s32.totalorder %s23, 0
      %p99 = por %p97, %p98
      %s100 = ssub.s32 %s24, %s43
      %s101 = ssub.s32 %s25, %s39
      %s102 = sor.u32 %s100, %s101
      %p103 = scmp.eq.s32.totalorder %s102, 0
      %s105 = sadd.s32 %s104, 1
      %s106 = scalar_select %p103, %s104, %s105
      %p109 = pneg %p103
      %p110 = scmp.eq.s32.totalorder %s17, 1
      %p111 = por %p109, %p110
      %p112 = scmp.ne.s32.totalorder %s104, %s107
      %p113 = scmp.eq.s32.totalorder %s17, 0
      %p114 = por %p112, %p113
      %p115 = scmp.ne.s32.totalorder %s104, %s107
      %p116 = scmp.eq.s32.totalorder %s22, 1
      %p117 = por %p115, %p116
      %p118 = scmp.ne.s32.totalorder %s107, %s108
      %p119 = scmp.eq.s32.totalorder %s22, 0
      %p120 = por %p118, %p119
      %p121 = scmp.ne.s32.totalorder %s107, %s108
      %p122 = scmp.eq.s32.totalorder %s23, 1
      %p123 = por %p121, %p122
      %p125 = scmp.ne.s32.totalorder %s108, %s124
      %p126 = scmp.eq.s32.totalorder %s23, 0
      %p127 = por %p125, %p126
      %p128 = scmp.le.s32.totalorder 1, %s17
      %p129 = scmp.lt.s32.totalorder %s17, 3
      %p130 = pnand %p128, %p129
      %p131 = pneg %p130
      // Predicated region
      $region9: #{tpu_custom_call.1} parent=5 // pred_check
        _
      $region10: #{tpu_custom_call.1} parent=5 // pred_check_branch
        %133 = sbr.rel (%p130) target = $region12
      $region11: #{tpu_custom_call.1} parent=5 // pred_region
        %s134 = ssub.s32 %s17, 1
      $region12: #{tpu_custom_call.1} parent=5 // pred_fallthru
        _
      %p135 = scmp.lt.s32.totalorder %s17, 2
      // Predicated region
      $region13: #{tpu_custom_call.1} parent=5 // pred_check
        %p136 = pneg %p135
      $region14: #{tpu_custom_call.1} parent=5 // pred_check_branch
        %138 = sbr.rel (%p136) target = $region16
      $region15: #{tpu_custom_call.1} parent=5 // pred_region
        // Predicated region
        $region17: #{tpu_custom_call.1} parent=15 // pred_check
          %p139 = pneg %p58
        $region18: #{tpu_custom_call.1} parent=15 // pred_check_branch
          %141 = sbr.rel (%p139) target = $region20
        $region19: #{tpu_custom_call.1} parent=15 // pred_region
          %s142 = sand.u32 %s48, 1
          %s143 = scalar_lea.sflag [#allocation5], %s142
          %s144 = sand.u32 %s48, 1
          %s145 = smul.addr %s144, 8
          %s146 = scalar_lea.vmem [#allocation4], %s145
          %s148 = ssub.s32 128, 128
          %149 = vsyncadd %s143, %s148
          %s150 = sadd.s32 %s25, %s24
          %s151 = smul.addr %s150, 128
          %s152 = scalar_lea.hbm %s0, %s151
          %s154 = sshll.u32 %s146, 4
          %s155 = int_to_ptr.vmem [resolvable:$true] %s154
          %157 = dma.hbm_to_vmem [thread:$0]  %s152, 128, %s155, %s143
        $region20: #{tpu_custom_call.1} parent=15 // pred_fallthru
          _
        // Predicated region
        $region21: #{tpu_custom_call.1} parent=15 // pred_check
          %p158 = pneg %p86
        $region22: #{tpu_custom_call.1} parent=15 // pred_check_branch
          %160 = sbr.rel (%p158) target = $region24
        $region23: #{tpu_custom_call.1} parent=15 // pred_region
          %s161 = sand.u32 %s76, 1
          %s162 = scalar_lea.sflag [#allocation8], %s161
          %s163 = sand.u32 %s76, 1
          %s164 = smul.addr %s163, 8
          %s165 = scalar_lea.vmem [#allocation7], %s164
          %s167 = ssub.s32 128, 128
          %168 = vsyncadd %s162, %s167
          %s169 = sadd.s32 %s26, %s24
          %s170 = smul.addr %s169, 128
          %s171 = scalar_lea.hbm %s1, %s170
          %s173 = sshll.u32 %s165, 4
          %s174 = int_to_ptr.vmem [resolvable:$true] %s173
          %176 = dma.hbm_to_vmem [thread:$0]  %s171, 128, %s174, %s162
        $region24: #{tpu_custom_call.1} parent=15 // pred_fallthru
          _
      $region16: #{tpu_custom_call.1} parent=5 // pred_fallthru
        _
      %p177 = scmp.le.s32.totalorder 1, %s17
      %p178 = scmp.lt.s32.totalorder %s17, 3
      %p179 = pnand %p177, %p178
      %p180 = pneg %p179
      // Predicated region
      $region25: #{tpu_custom_call.1} parent=5 // pred_check
        _
      $region26: #{tpu_custom_call.1} parent=5 // pred_check_branch
        %182 = sbr.rel (%p179) target = $region28
      $region27: #{tpu_custom_call.1} parent=5 // pred_region
        %s183 = ssub.s32 %s17, 1
        %s184 = sand.u32 %s51, 1
        %s185 = scalar_lea.sflag [#allocation5], %s184
        %s186 = sand.u32 %s51, 1
        %s187 = smul.addr %s186, 8
        %s188 = scalar_lea.vmem [#allocation4], %s187
        // Predicated region
        $region29: #{tpu_custom_call.1} parent=27 // pred_check
          %p189 = pneg %p64
        $region30: #{tpu_custom_call.1} parent=27 // pred_check_branch
          %191 = sbr.rel (%p189) target = $region32
        $region31: #{tpu_custom_call.1} parent=27 // pred_region
          %192 = dma.done %s185, 128
        $region32: #{tpu_custom_call.1} parent=27 // pred_fallthru
          _
        %s193 = sand.u32 %s79, 1
        %s194 = scalar_lea.sflag [#allocation8], %s193
        %s195 = sand.u32 %s79, 1
        %s196 = smul.addr %s195, 8
        %s197 = scalar_lea.vmem [#allocation7], %s196
        // Predicated region
        $region33: #{tpu_custom_call.1} parent=27 // pred_check
          %p198 = pneg %p92
        $region34: #{tpu_custom_call.1} parent=27 // pred_check_branch
          %200 = sbr.rel (%p198) target = $region36
        $region35: #{tpu_custom_call.1} parent=27 // pred_region
          %201 = dma.done %s194, 128
        $region36: #{tpu_custom_call.1} parent=27 // pred_fallthru
          _
        %s202 = sand.u32 %s51, 1
        %s203 = scalar_lea.sflag [#allocation5], %s202
        %s204 = sand.u32 %s51, 1
        %s205 = smul.addr %s204, 8
        %s206 = scalar_lea.vmem [#allocation4], %s205
        %p207 = pneg %p64
        %p208 = pneg %p61
        %s209 = sand.u32 %s79, 1
        %s210 = scalar_lea.sflag [#allocation8], %s209
        %s211 = sand.u32 %s79, 1
        %s212 = smul.addr %s211, 8
        %s213 = scalar_lea.vmem [#allocation7], %s212
        %p214 = pneg %p92
        %p215 = pneg %p89
        %p216 = pneg %p120
        %p217 = pneg %p117
        %s218 = sand.u32 %s107, 1
        %s219 = scalar_lea.sflag [#allocation6], %s218
        %s220 = sand.u32 %s107, 1
        %s221 = smul.addr %s220, 8
        %s222 = scalar_lea.vmem [#allocation9], %s221
        %p223 = scmp.eq.s32.totalorder %s29, 0
        // Predicated region
        $region37: #{tpu_custom_call.1} parent=27 // pred_check
          %p224 = pneg %p223
        $region38: #{tpu_custom_call.1} parent=27 // pred_check_branch
          %226 = sbr.rel (%p224) target = $region40
        $region39: #{tpu_custom_call.1} parent=27 // pred_region
          %227 = vst [vmem:[#allocation2] sm:$0xff] 0.0
          %v228 = vld [vmem:[%s188] sm:$0xff]
          %v229 = vmul.f32 %v228, %v228
          %230 = vadd.xlane.f32.xlu0 %v229
          %v231 = vpop.xlane.xlu0 %230
          %v232 = vrsqrt.pop %v231
          %vm233 = vcmask 7168
          %234 = vst.msk [vmem:[#allocation3] sm:$0xff] %vm233, %v232
        $region40: #{tpu_custom_call.1} parent=27 // pred_fallthru
          _
        %v235 = vld [vmem:[%s197] sm:$0xff]
        %v236 = vmul.f32 %v235, %v235
        %237 = vadd.xlane.f32.xlu0 %v236
        %v238 = vpop.xlane.xlu0 %237
        %v239 = vrsqrt.pop %v238
        %v240 = vmul.f32 %v235, %v239
        %v241 = vld [vmem:[%s188] sm:$0xff]
        %242 = vmatprep.subr.mxu0 0.0
        %243 = vmatpush1.xpose.msra.mxu0 %v240
        %244 = vmatprep.subr.mxu0 0.0
        %245 = vmatpush1.xpose.msra.mxu0 0.0
        %246 = vmatprep.subr.mxu0 0.0
        %247 = vmatpush1.xpose.msra.mxu0 0.0
        %248 = vmatprep.subr.mxu0 0.0
        %249 = vmatpush1.xpose.msra.mxu0 0.0
        %250 = vmatprep.subr.mxu0 0.0
        %251 = vmatpush1.xpose.msra.mxu0 0.0
        %252 = vmatprep.subr.mxu0 0.0
        %253 = vmatpush1.xpose.msra.mxu0 0.0
        %254 = vmatprep.subr.mxu0 0.0
        %255 = vmatpush1.xpose.msra.mxu0 0.0
        %256 = vmatprep.subr.mxu0 0.0
        %257 = vmatpush1.xpose.msra.mxu0 0.0
        %258 = vmatprep.subr.mxu0 0.0
        %259 = vmatpush1.xpose.msra.mxu0 0.0
        %260 = vmatprep.subr.mxu0 0.0
        %261 = vmatpush1.xpose.msra.mxu0 0.0
        %262 = vmatprep.subr.mxu0 0.0
        %263 = vmatpush1.xpose.msra.mxu0 0.0
        %264 = vmatprep.subr.mxu0 0.0
        %265 = vmatpush1.xpose.msra.mxu0 0.0
        %266 = vmatprep.subr.mxu0 0.0
        %267 = vmatpush1.xpose.msra.mxu0 0.0
        %268 = vmatprep.subr.mxu0 0.0
        %269 = vmatpush1.xpose.msra.mxu0 0.0
        %270 = vmatprep.subr.mxu0 0.0
        %271 = vmatpush1.xpose.msra.mxu0 0.0
        %272 = vmatprep.subr.mxu0 0.0
        %273 = vmatpush1.xpose.msra.mxu0 0.0
        %274 = vmatprep.subr.mxu0 0.0
        %275 = vmatpush1.xpose.msra.mxu0 0.0
        %276 = vmatprep.subr.mxu0 0.0
        %277 = vmatpush1.xpose.msra.mxu0 0.0
        %278 = vmatprep.subr.mxu0 0.0
        %279 = vmatpush1.xpose.msra.mxu0 0.0
        %280 = vmatprep.subr.mxu0 0.0
        %281 = vmatpush1.xpose.msra.mxu0 0.0
        %282 = vmatprep.subr.mxu0 0.0
        %283 = vmatpush1.xpose.msra.mxu0 0.0
        %284 = vmatprep.subr.mxu0 0.0
        %285 = vmatpush1.xpose.msra.mxu0 0.0
        %286 = vmatprep.subr.mxu0 0.0
        %287 = vmatpush1.xpose.msra.mxu0 0.0
        %288 = vmatprep.subr.mxu0 0.0
        %289 = vmatpush1.xpose.msra.mxu0 0.0
        %290 = vmatprep.subr.mxu0 0.0
        %291 = vmatpush1.xpose.msra.mxu0 0.0
        %292 = vmatprep.subr.mxu0 0.0
        %293 = vmatpush1.xpose.msra.mxu0 0.0
        %294 = vmatprep.subr.mxu0 0.0
        %295 = vmatpush1.xpose.msra.mxu0 0.0
        %296 = vmatprep.subr.mxu0 0.0
        %297 = vmatpush1.xpose.msra.mxu0 0.0
        %298 = vmatprep.subr.mxu0 0.0
        %299 = vmatpush1.xpose.msra.mxu0 0.0
        %300 = vmatprep.subr.mxu0 0.0
        %301 = vmatpush1.xpose.msra.mxu0 0.0
        %302 = vmatprep.subr.mxu0 0.0
        %303 = vmatpush1.xpose.msra.mxu0 0.0
        %304 = vmatprep.subr.mxu0 0.0
        %305 = vmatpush1.xpose.msra.mxu0 0.0
        %306 = vmatprep.mubr.f32.mxu0 0.0
        %307 = vmatmul.mubr.f32.gmra.mrb[0].mxu0 %v241
        %v308 = vpop.f32.mrb[0].mxu0
        %v309 = vadd.f32 0.0, %v308
        %v310 = vpop.f32.mrb[0].mxu0
        %311 = vdwg.mxu0
        %v312 = vld [vmem:[#allocation3] sm:$0xff]
        %314 = vset.pattern.permute.xlu0 0
        %315 = vperm.xlu0 %314, %v312
        %v316 = vpop.permute.xlu0 %315
        %v318 = vmul.f32 %v309, %v316
        %v319 = vtanh.pop %v318
        %v320 = vld [vmem:[#allocation2] sm:$0xff]
        %vm321 = vcmask 64512
        %v323 = vsel %vm321, %v319, 0
        %325 = vmatprep.subr.mxu0 0.0
        %326 = vmatpush1.msra.mxu0 %v235
        %327 = vmatprep.subr.mxu0 0.0
        %328 = vmatpush1.msra.mxu0 0.0
        %329 = vmatprep.subr.mxu0 0.0
        %330 = vmatpush1.msra.mxu0 0.0
        %331 = vmatprep.subr.mxu0 0.0
        %332 = vmatpush1.msra.mxu0 0.0
        %333 = vmatprep.subr.mxu0 0.0
        %334 = vmatpush1.msra.mxu0 0.0
        %335 = vmatprep.subr.mxu0 0.0
        %336 = vmatpush1.msra.mxu0 0.0
        %337 = vmatprep.subr.mxu0 0.0
        %338 = vmatpush1.msra.mxu0 0.0
        %339 = vmatprep.subr.mxu0 0.0
        %340 = vmatpush1.msra.mxu0 0.0
        %341 = vmatprep.subr.mxu0 0.0
        %342 = vmatpush1.msra.mxu0 0.0
        %343 = vmatprep.subr.mxu0 0.0
        %344 = vmatpush1.msra.mxu0 0.0
        %345 = vmatprep.subr.mxu0 0.0
        %346 = vmatpush1.msra.mxu0 0.0
        %347 = vmatprep.subr.mxu0 0.0
        %348 = vmatpush1.msra.mxu0 0.0
        %349 = vmatprep.subr.mxu0 0.0
        %350 = vmatpush1.msra.mxu0 0.0
        %351 = vmatprep.subr.mxu0 0.0
        %352 = vmatpush1.msra.mxu0 0.0
        %353 = vmatprep.subr.mxu0 0.0
        %354 = vmatpush1.msra.mxu0 0.0
        %355 = vmatprep.subr.mxu0 0.0
        %356 = vmatpush1.msra.mxu0 0.0
        %357 = vmatprep.subr.mxu0 0.0
        %358 = vmatpush1.msra.mxu0 0.0
        %359 = vmatprep.subr.mxu0 0.0
        %360 = vmatpush1.msra.mxu0 0.0
        %361 = vmatprep.subr.mxu0 0.0
        %362 = vmatpush1.msra.mxu0 0.0
        %363 = vmatprep.subr.mxu0 0.0
        %364 = vmatpush1.msra.mxu0 0.0
        %365 = vmatprep.subr.mxu0 0.0
        %366 = vmatpush1.msra.mxu0 0.0
        %367 = vmatprep.subr.mxu0 0.0
        %368 = vmatpush1.msra.mxu0 0.0
        %369 = vmatprep.subr.mxu0 0.0
        %370 = vmatpush1.msra.mxu0 0.0
        %371 = vmatprep.subr.mxu0 0.0
        %372 = vmatpush1.msra.mxu0 0.0
        %373 = vmatprep.subr.mxu0 0.0
        %374 = vmatpush1.msra.mxu0 0.0
        %375 = vmatprep.subr.mxu0 0.0
        %376 = vmatpush1.msra.mxu0 0.0
        %377 = vmatprep.subr.mxu0 0.0
        %378 = vmatpush1.msra.mxu0 0.0
        %379 = vmatprep.subr.mxu0 0.0
        %380 = vmatpush1.msra.mxu0 0.0
        %381 = vmatprep.subr.mxu0 0.0
        %382 = vmatpush1.msra.mxu0 0.0
        %383 = vmatprep.subr.mxu0 0.0
        %384 = vmatpush1.msra.mxu0 0.0
        %385 = vmatprep.subr.mxu0 0.0
        %386 = vmatpush1.msra.mxu0 0.0
        %387 = vmatprep.subr.mxu0 0.0
        %388 = vmatpush1.msra.mxu0 0.0
        %389 = vmatprep.mubr.f32.mxu0 0.0
        %390 = vmatmul.mubr.f32.gmra.mrb[0].mxu0 %v323
        %v391 = vpop.f32.mrb[0].mxu0
        %v392 = vadd.f32 0.0, %v391
        %v393 = vpop.f32.mrb[0].mxu0
        %394 = vdwg.mxu0
        %v395 = vadd.f32 %v320, %v392
        %396 = vst [vmem:[#allocation2] sm:$0xff] %v395
        // Predicated region
        $region41: #{tpu_custom_call.1} parent=27 // pred_check
          %p397 = pneg %p223
        $region42: #{tpu_custom_call.1} parent=27 // pred_check_branch
          %399 = sbr.rel (%p397) target = $region44
        $region43: #{tpu_custom_call.1} parent=27 // pred_region
          %v400 = vld [vmem:[#allocation2] sm:$0xff]
          %401 = vst [vmem:[%s222] sm:$0xff] %v400
        $region44: #{tpu_custom_call.1} parent=27 // pred_fallthru
          _
        %s402 = sand.u32 %s107, 1
        %s403 = scalar_lea.sflag [#allocation6], %s402
        %s404 = sand.u32 %s107, 1
        %s405 = smul.addr %s404, 8
        %s406 = scalar_lea.vmem [#allocation9], %s405
        // Predicated region
        $region45: #{tpu_custom_call.1} parent=27 // pred_check
          %p407 = pneg %p117
        $region46: #{tpu_custom_call.1} parent=27 // pred_check_branch
          %409 = sbr.rel (%p407) target = $region48
        $region47: #{tpu_custom_call.1} parent=27 // pred_region
          %s411 = ssub.s32 128, 128
          %412 = vsyncadd %s403, %s411
          %s413 = sadd.s32 %s28, %s27
          %s414 = smul.addr %s413, 128
          %s415 = scalar_lea.hbm %s2, %s414
          %s417 = sshll.u32 %s406, 4
          %s418 = int_to_ptr.vmem [resolvable:$true] %s417
          %420 = dma.vmem_to_hbm [thread:$0]  %s418, 128, %s415, %s403
        $region48: #{tpu_custom_call.1} parent=27 // pred_fallthru
          _
      $region28: #{tpu_custom_call.1} parent=5 // pred_fallthru
        _
      %p421 = scmp.le.s32.totalorder 2, %s17
      // Predicated region
      $region49: #{tpu_custom_call.1} parent=5 // pred_check
        %p422 = pneg %p421
      $region50: #{tpu_custom_call.1} parent=5 // pred_check_branch
        %424 = sbr.rel (%p422) target = $region52
      $region51: #{tpu_custom_call.1} parent=5 // pred_region
        %s425 = ssub.s32 %s17, 2
        // Predicated region
        $region53: #{tpu_custom_call.1} parent=51 // pred_check
          %p426 = pneg %p123
        $region54: #{tpu_custom_call.1} parent=51 // pred_check_branch
          %428 = sbr.rel (%p426) target = $region56
        $region55: #{tpu_custom_call.1} parent=51 // pred_region
          %s429 = sand.u32 %s108, 1
          %s430 = scalar_lea.sflag [#allocation6], %s429
          %s431 = sand.u32 %s108, 1
          %s432 = smul.addr %s431, 8
          %s433 = scalar_lea.vmem [#allocation9], %s432
          %434 = dma.done %s430, 128
        $region56: #{tpu_custom_call.1} parent=51 // pred_fallthru
          _
      $region52: #{tpu_custom_call.1} parent=5 // pred_fallthru
        _
    $region6: #{tpu_custom_call.1} parent=1 // loop_footer
      %s21 = sadd.s32 1, %s17
    $region7: #{tpu_custom_call.1} parent=1 // loop_footer_branch
      %16 = sbr.rel target = $region3
    $region8: #{tpu_custom_call.1} parent=1 // loop_exit
      _
    %435 = vsyncpa [#allocation5], 1
    %s436 = scalar_lea.sflag [#allocation5], 1
    %437 = vsyncpa %s436, 1
    %438 = vsyncpa [#allocation8], 1
    %s439 = scalar_lea.sflag [#allocation8], 1
    %440 = vsyncpa %s439, 1
    %441 = vsyncpa [#allocation6], 1
    %s442 = scalar_lea.sflag [#allocation6], 1
    %443 = vsyncpa %s442, 1

</llo_original>
